<compile_context>
chip_gen: v7x
topology: tpu7x:2x2x1
jax: 0.10.0
libtpu: 0.0.40
codegen_flags: <defaults>
</compile_context>

<pallas_src>
import functools

import jax
import jax.numpy as jnp
from jax import lax
from jax.experimental import pallas as pl
from jax.experimental.pallas import tpu as pltpu


# --------------------------------------------------------------------------- helpers
def _vmem_cap_bytes():
    """Per-generation VMEM ceiling (128 MiB on v5e/v6e, 64 MiB on v7x) minus headroom."""
    try:
        cap = int(pltpu.get_tpu_info().vmem_capacity_bytes)
    except Exception:
        cap = 64 << 20                       # conservative (v7x) fallback
    return max(cap - (12 << 20), 16 << 20)


def _clamp_vmem(need_bytes):
    return int(min(max(int(need_bytes), 16 << 20), _vmem_cap_bytes()))


def _row_tile(m, target=256):
    """Largest multiple-of-8 divisor of m that is <= target (m itself if already small)."""
    if m <= target:
        return m
    for t in range(target - target % 8, 7, -8):
        if m % t == 0:
            return t
    return m


# --------------------------------------------------------------------------- linear kernels
def _linear_kernel(x_ref, w_ref, o_ref):
    o_ref[...] = jnp.dot(x_ref[...], w_ref[...],
                         preferred_element_type=jnp.float32).astype(o_ref.dtype)


def _linear_bias_kernel(x_ref, w_ref, b_ref, o_ref):
    acc = jnp.dot(x_ref[...], w_ref[...], preferred_element_type=jnp.float32)
    o_ref[...] = (acc + b_ref[...]).astype(o_ref.dtype)


def _linear(x2d, w, b=None, *, out_dtype):
    """Row-tiled y = x2d @ w (+ b).  Weight block index is constant across the grid, so the
    weight is DMA'd from HBM exactly once and stays resident in VMEM."""
    M, Din = x2d.shape
    Dout = w.shape[1]
    tm = _row_tile(M)
    grid = (M // tm,)

    in_specs = [pl.BlockSpec((tm, Din), lambda i: (i, 0)),
                pl.BlockSpec((Din, Dout), lambda i: (0, 0))]      # resident weight
    args = [x2d, w]
    kernel = _linear_kernel
    if b is not None:
        in_specs.append(pl.BlockSpec((1, Dout), lambda i: (0, 0)))
        args.append(b)
        kernel = _linear_bias_kernel

    out_bytes = jnp.dtype(out_dtype).itemsize
    need = (2 * tm * Din * x2d.dtype.itemsize        # double-buffered x tiles
            + 2 * Din * Dout * w.dtype.itemsize      # weight (budget two buffers)
            + 2 * tm * Dout * out_bytes              # double-buffered output tiles
            + tm * Dout * 4                          # f32 accumulator intermediate
            + Dout * 4                               # bias
            + (4 << 20))                             # headroom

    return pl.pallas_call(
        kernel,
        out_shape=jax.ShapeDtypeStruct((M, Dout), out_dtype),
        grid_spec=pltpu.PrefetchScalarGridSpec(
            num_scalar_prefetch=0, grid=grid,
            in_specs=in_specs,
            out_specs=pl.BlockSpec((tm, Dout), lambda i: (i, 0))),
        compiler_params=pltpu.CompilerParams(
            dimension_semantics=("parallel",),
            vmem_limit_bytes=_clamp_vmem(need)),
    )(*args)


# --------------------------------------------------------------------------- flash attention
def _flash_attn_kernel(q_ref, k_ref, v_ref, o_ref, m_ref, l_ref, acc_ref):
    """Grid = (B, head_groups, Q_tiles, KV_tiles); online softmax over the KV axis."""
    qi = pl.program_id(2)
    ki = pl.program_id(3)

    @pl.when(ki == 0)
    def _():
        m_ref[...] = jnp.full_like(m_ref, -jnp.inf)
        l_ref[...] = jnp.zeros_like(l_ref)
        acc_ref[...] = jnp.zeros_like(acc_ref)

    # Causal block skipping: KV tiles strictly above the diagonal contribute nothing.
    @pl.when(ki <= qi)
    def _():
        q = q_ref[0]                                           # (G, Tq, hs) bf16 (pre-scaled)
        k = k_ref[0]                                           # (G, Tk, hs) bf16
        v = v_ref[0]                                           # (G, Tk, hs) bf16
        s = jnp.einsum('gqd,gkd->gqk', q, k,
                       preferred_element_type=jnp.float32)     # (G, Tq, Tk) f32

        # The tril mask only matters on the diagonal block (Tq == Tk tiles).
        row = lax.broadcasted_iota(jnp.int32, s.shape, 1)
        col = lax.broadcasted_iota(jnp.int32, s.shape, 2)
        s = jnp.where(jnp.logical_or(ki < qi, col <= row), s, -1e30)

        m_prev = m_ref[...]
        m_new = jnp.maximum(m_prev, jnp.max(s, axis=-1, keepdims=True))
        alpha = jnp.exp(m_prev - m_new)
        p = jnp.exp(s - m_new)
        l_ref[...] = alpha * l_ref[...] + jnp.sum(p, axis=-1, keepdims=True)
        acc_ref[...] = alpha * acc_ref[...] + jnp.einsum(
            'gqk,gkd->gqd', p.astype(v.dtype), v,
            preferred_element_type=jnp.float32)
        m_ref[...] = m_new

    # Diagonal block is the last contributor for this Q tile under causal masking.
    @pl.when(ki == qi)
    def _():
        inv_l = pl.reciprocal(l_ref[...], approx=True)
        o_ref[0] = (acc_ref[...] * inv_l).astype(o_ref.dtype)


def _flash_attention(q, k, v):
    """q, k, v: (B, H, T, hs) bf16 -> (B, H, T, hs) bf16 causal attention (q pre-scaled)."""
    B, H, T, hs = q.shape

    # Group heads so G*hs >= 256 where possible (amortizes grid-step overhead, widens the
    # lane footprint); must divide H.
    G = min(H, max(1, 256 // hs))
    while H % G:
        G -= 1
    tile_t = _row_tile(T, target=256)
    grid = (B, H // G, T // tile_t, T // tile_t)

    def q_map(b, g, qi, ki):
        return (b, g, qi, 0)

    def kv_map(b, g, qi, ki):
        return (b, g, ki, 0)

    need = (2 * 3 * G * tile_t * hs * 2              # q/k/v bf16 blocks, double buffered
            + 2 * G * tile_t * hs * 2                # output bf16 block, double buffered
            + G * tile_t * hs * 4                    # f32 acc scratch
            + 2 * G * tile_t * 4                     # m / l scratch
            + 4 * G * tile_t * tile_t * 4            # s / p / exp / mask intermediates
            + (4 << 20))                             # headroom

    return pl.pallas_call(
        _flash_attn_kernel,
        out_shape=jax.ShapeDtypeStruct((B, H, T, hs), q.dtype),
        grid_spec=pltpu.PrefetchScalarGridSpec(
            num_scalar_prefetch=0, grid=grid,
            in_specs=[pl.BlockSpec((1, G, tile_t, hs), q_map),
                      pl.BlockSpec((1, G, tile_t, hs), kv_map),
                      pl.BlockSpec((1, G, tile_t, hs), kv_map)],
            out_specs=pl.BlockSpec((1, G, tile_t, hs), q_map),
            scratch_shapes=[pltpu.VMEM((G, tile_t, 1), jnp.float32),
                            pltpu.VMEM((G, tile_t, 1), jnp.float32),
                            pltpu.VMEM((G, tile_t, hs), jnp.float32)]),
        compiler_params=pltpu.CompilerParams(
            dimension_semantics=("parallel", "parallel", "parallel", "arbitrary"),
            vmem_limit_bytes=_clamp_vmem(need)),
    )(q, k, v)


# --------------------------------------------------------------------------- module forward
def multi_head_attention(x, params):
    """x: (B, T, D) float32 -> (B, T, D) float32.  Eval-mode MultiHeadAttention.forward."""
    B, T, D = x.shape
    H = int(params['num_heads'])
    hs = D // H
    scale = float(hs) ** -0.5

    # Fused QKV weight (D, 3*D): columns = [q heads | k heads | v heads], bf16,
    # with 1/sqrt(hs) folded into the Q columns (no per-tile VPU scale in the kernel).
    wq = params['wq'].transpose(1, 0, 2).reshape(D, D) * scale
    wk = params['wk'].transpose(1, 0, 2).reshape(D, D)
    wv = params['wv'].transpose(1, 0, 2).reshape(D, D)
    wqkv = jnp.concatenate([wq, wk, wv], axis=1).astype(jnp.bfloat16)   # (D, 3D)
    wproj = params['wproj'].astype(jnp.bfloat16)                        # (D, D)
    bproj = params['bproj'].astype(jnp.float32)                         # (1, D)

    # 1) fused QKV projection over M = B*T rows; x cast to bf16 in the wrapper.
    x_bf = x.astype(jnp.bfloat16).reshape(B * T, D)
    qkv = _linear(x_bf, wqkv, out_dtype=jnp.bfloat16)                   # (B*T, 3D) bf16

    # Layout plumbing (XLA): -> (3, B, H, T, hs) so per-head tiles are lane-dense.
    qkv = qkv.reshape(B, T, 3, H, hs).transpose(2, 0, 3, 1, 4)
    q, k, v = qkv[0], qkv[1], qkv[2]

    # 2) causal flash attention (online softmax, KV tiling, causal block skipping).
    attn = _flash_attention(q, k, v)                                    # (B, H, T, hs) bf16

    # 3) output projection: concat(heads) @ Wproj + b (weights resident, K = D).
    attn2d = attn.transpose(0, 2, 1, 3).reshape(B * T, D)
    out = _linear(attn2d, wproj, bproj, out_dtype=jnp.float32)          # (B*T, D) f32
    # TODO(synk): attention-weight dropout and projection dropout are identity (eval mode).
    return out.reshape(B, T, D)


# --------------------------------------------------------------------------- params / reference
def init_params(key, d_model, num_heads):
    """Per-head q/k/v weights (no bias, as in the module) laid out so y = x @ W."""
    hs = d_model // num_heads
    kq, kk, kv, kp, kb = jax.random.split(key, 5)

    def nrm(k, shape, scale=0.1):
        return scale * jax.random.normal(k, shape, dtype=jnp.float32)

    return dict(
        num_heads=num_heads,
        wq=nrm(kq, (num_heads, d_model, hs)),
        wk=nrm(kk, (num_heads, d_model, hs)),
        wv=nrm(kv, (num_heads, d_model, hs)),
        wproj=nrm(kp, (d_model, d_model)),       # out = concat(heads) @ wproj + bproj
        bproj=nrm(kb, (1, d_model)),
    )


def reference_forward(x, params):
    """Pure-JAX f32 replica of the PyTorch MultiHeadAttention.forward (eval mode)."""
    B, T, D = x.shape
    H = int(params['num_heads'])
    hs = D // H
    causal = jnp.tril(jnp.ones((T, T), bool))
    heads = []
    for h in range(H):
        q = x @ params['wq'][h]
        k = x @ params['wk'][h]
        v = x @ params['wv'][h]
        s = jnp.einsum('btd,bsd->bts', q, k) * hs ** -0.5
        s = jnp.where(causal, s, -jnp.inf)
        heads.append(jnp.einsum('bts,bsd->btd', jax.nn.softmax(s, axis=-1), v))
    attn = jnp.concatenate(heads, axis=-1)
    return attn @ params['wproj'] + params['bproj']


if __name__ == "__main__":
    d_model, num_heads, context_length = 32, 4, 8
    B, T = 2, 8

    key = jax.random.PRNGKey(0)
    pkey, xkey = jax.random.split(key)
    params = init_params(pkey, d_model, num_heads)
    x = jax.random.normal(xkey, (B, T, d_model), dtype=jnp.float32)

    out = multi_head_attention(x, params)
    jax.block_until_ready(out)

    ref = reference_forward(x, params)
    assert out.shape == (B, T, d_model)
    err = float(jnp.max(jnp.abs(out - ref)))
    # bf16 matmul operands / intermediates (f32 accumulation) vs f32 reference.
    assert jnp.allclose(out, ref, atol=2e-2, rtol=2e-2), err
    print("KERNEL_OK")
</pallas_src>

<mosaic_0001>
module attributes {stable_mosaic.version = 11 : i64} {
  func.func @_linear_kernel(%arg0: i32, %arg1: memref<16x32xbf16, #tpu.memory_space<vmem>>, %arg2: memref<32x96xbf16, #tpu.memory_space<vmem>>, %arg3: memref<16x96xbf16, #tpu.memory_space<vmem>>) attributes {dimension_semantics = [#tpu.dimension_semantics<parallel>], iteration_bounds = array<i64: 1>, scalar_prefetch = 0 : i64, scratch_operands = 0 : i64, tpu.core_type = #tpu.core_type<tc>, window_params = [{transform_indices = @transform_0, window_bounds = array<i64: 16, 32>}, {pipeline_mode = #tpu.pipeline_mode<synchronous>, transform_indices = @transform_1, window_bounds = array<i64: 32, 96>}, {transform_indices = @transform_2, window_bounds = array<i64: 16, 96>}]} {
    %c0 = arith.constant 0 : index
    %c0_0 = arith.constant 0 : index
    %0 = vector.load %arg1[%c0, %c0_0] : memref<16x32xbf16, #tpu.memory_space<vmem>>, vector<16x32xbf16>
    %c0_1 = arith.constant 0 : index
    %c0_2 = arith.constant 0 : index
    %1 = vector.load %arg2[%c0_1, %c0_2] : memref<32x96xbf16, #tpu.memory_space<vmem>>, vector<32x96xbf16>
    %cst = arith.constant dense<0.000000e+00> : vector<16x96xf32>
    %2 = tpu.matmul %0, %1, %cst {dimension_numbers = #tpu.dot_dimension_numbers<[1], [0], [0], [1], [0, 0, 1, 1], [], []>} : vector<16x32xbf16>, vector<32x96xbf16>, vector<16x96xf32> -> vector<16x96xf32>
    %3 = arith.truncf %2 : vector<16x96xf32> to vector<16x96xbf16>
    %c0_3 = arith.constant 0 : index
    %c0_4 = arith.constant 0 : index
    %4 = vector.load %arg3[%c0_3, %c0_4] : memref<16x96xbf16, #tpu.memory_space<vmem>>, vector<16x96xbf16>
    tpu.vector_store %arg3[%c0_3, %c0_4], %3 {strides = array<i32>} : memref<16x96xbf16, #tpu.memory_space<vmem>>, vector<16x96xbf16>,
    return
  }
  func.func @transform_0(%arg0: i32) -> (i32, i32) {
    %c0_i32 = arith.constant 0 : i32
    %c0_i32_0 = arith.constant 0 : i32
    return %arg0, %c0_i32 : i32, i32
  }
  func.func @transform_1(%arg0: i32) -> (i32, i32) {
    %c0_i32 = arith.constant 0 : i32
    %c0_i32_0 = arith.constant 0 : i32
    %c0_i32_1 = arith.constant 0 : i32
    return %c0_i32, %c0_i32_0 : i32, i32
  }
  func.func @transform_2(%arg0: i32) -> (i32, i32) {
    %c0_i32 = arith.constant 0 : i32
    %c0_i32_0 = arith.constant 0 : i32
    return %arg0, %c0_i32 : i32, i32
  }
}

</mosaic_0001>

<llo_original>
// kernel: tpu_custom_call.1
$region0: #{tpu_custom_call.1}
  #allocation0 [shape = 'u32[]', space=smem, size = 0x4, offset = 0x4, fixed_abs, tag = 'smem constant byte address 0x4 - core index']
  #allocation1 [shape = 'u32[144,128]{1,0:T(1,128)}', space=vmem, size = 0x12000, scoped, tag = 'internal scratch']
  %s0 = inlined_call_operand.hbm [shape: bf16[16,32], index: 0, kind: input, shape index: {}]
  %s1 = inlined_call_operand.hbm [shape: bf16[32,96], index: 1, kind: input, shape index: {}]
  %s2 = inlined_call_operand.hbm [shape: bf16[16,96], index: 2, kind: output, shape index: {}]
  %s3 = sld [smem:[#allocation0]]
  $region26: #{tpu_custom_call.1} parent=0
    _
  %s5 = ssub.s32 1, %s3
  %s6 = scalar_select 0, %s5, %s3
  $region1: #{tpu_custom_call.1} parent=0
    #allocation2 [shape = 'u8[4096]{0}', space=vmem, size = 0x1000, scoped, tag = 'input window, operand 0, single buffered']
    #allocation3 [shape = 's32[1]{0}', space=sflag, size = 0x4, scoped, tag = 'scoped memory for tpu_custom_call.1']
    #allocation4 [shape = 's32[1]{0}', space=sflag, size = 0x4, scoped, tag = 'scoped memory for tpu_custom_call.1']
    #allocation5 [shape = 'u8[8192]{0}', space=vmem, size = 0x2000, scoped, tag = 'input window, operand 1, single buffered']
    #allocation6 [shape = 's32[1]{0}', space=sflag, size = 0x4, scoped, tag = 'scoped memory for tpu_custom_call.1']
    #allocation7 [shape = 'u8[4096]{0}', space=vmem, size = 0x1000, scoped, tag = 'output window, operand 0, single buffered']
    %7 = vsyncpa [#allocation3], 0
    %8 = vsyncpa [#allocation6], 0
    %9 = vsyncpa [#allocation4], 0
    // Predicated region
    $region2: #{tpu_custom_call.1} parent=1 // pred_check
      _
    $region3: #{tpu_custom_call.1} parent=1 // pred_check_branch
      %11 = sbr.rel (0) target = $region5
    $region4: #{tpu_custom_call.1} parent=1 // pred_region
      %s13 = ssub.s32 128, 128
      %14 = vsyncadd [#allocation3], %s13
      %s15 = sshll.u32 [#allocation2], 4
      %s16 = int_to_ptr.vmem [resolvable:$true] %s15
      %21 = dma.hbm_to_vmem [thread:$0]  %s0, 128, %s16, [#allocation3], 64, 64, 4
    $region5: #{tpu_custom_call.1} parent=1 // pred_fallthru
      _
    // Predicated region
    $region6: #{tpu_custom_call.1} parent=1 // pred_check
      _
    $region7: #{tpu_custom_call.1} parent=1 // pred_check_branch
      %23 = sbr.rel (0) target = $region9
    $region8: #{tpu_custom_call.1} parent=1 // pred_region
      %s25 = ssub.s32 256, 256
      %26 = vsyncadd [#allocation6], %s25
      %s27 = sshll.u32 [#allocation5], 4
      %s28 = int_to_ptr.vmem [resolvable:$true] %s27
      %33 = dma.hbm_to_vmem [thread:$0]  %s1, 256, %s28, [#allocation6], 64, 64, 4
    $region9: #{tpu_custom_call.1} parent=1 // pred_fallthru
      _
    // Predicated region
    $region10: #{tpu_custom_call.1} parent=1 // pred_check
      _
    $region11: #{tpu_custom_call.1} parent=1 // pred_check_branch
      %35 = sbr.rel (0) target = $region13
    $region12: #{tpu_custom_call.1} parent=1 // pred_region
      %36 = dma.done [#allocation3], 128
    $region13: #{tpu_custom_call.1} parent=1 // pred_fallthru
      _
    // Predicated region
    $region14: #{tpu_custom_call.1} parent=1 // pred_check
      _
    $region15: #{tpu_custom_call.1} parent=1 // pred_check_branch
      %38 = sbr.rel (0) target = $region17
    $region16: #{tpu_custom_call.1} parent=1 // pred_region
      %39 = dma.done [#allocation6], 256
    $region17: #{tpu_custom_call.1} parent=1 // pred_fallthru
      _
    %v41 = vld [vmem:[#allocation2] sm:$0xf]
    %v42 = vld [vmem:[#allocation2 + $0x4] sm:$0xf]
    %v43 = vld [vmem:[#allocation5] sm:$0xf]
    %v44 = vld [vmem:[#allocation5 + $0x4] sm:$0xf]
    %v45 = vld [vmem:[#allocation5 + $0x8] sm:$0xf]
    %v46 = vld [vmem:[#allocation5 + $0xc] sm:$0xf]
    %v49 = vunpack.c.l.b16 %v41
    %v50 = vunpack.c.l.b16 %v42
    %v51 = vpack.c.b16 %v50, %v49
    %v56 = vunpack.c.l.b16 %v43
    %v57 = vunpack.c.l.b16 %v44
    %v58 = vunpack.c.l.b16 %v45
    %v59 = vunpack.c.l.b16 %v46
    %v60 = vpack.c.b16 %v57, %v56
    %v61 = vpack.c.b16 %v59, %v58
    %vm64 = vcmask 261120
    %v66 = vsel %vm64, %v51, 0
    %68 = vmatprep.subr.bf16.mxu0 0
    %69 = vmatpush1.bf16.msra.mxu0 %v60
    %70 = vmatprep.subr.bf16.mxu0 0
    %71 = vmatpush1.bf16.msra.mxu0 %v61
    %72 = vmatprep.subr.bf16.mxu0 0
    %73 = vmatpush1.bf16.msra.mxu0 0
    %74 = vmatprep.subr.bf16.mxu0 0
    %75 = vmatpush1.bf16.msra.mxu0 0
    %76 = vmatprep.subr.bf16.mxu0 0
    %77 = vmatpush1.bf16.msra.mxu0 0
    %78 = vmatprep.subr.bf16.mxu0 0
    %79 = vmatpush1.bf16.msra.mxu0 0
    %80 = vmatprep.subr.bf16.mxu0 0
    %81 = vmatpush1.bf16.msra.mxu0 0
    %82 = vmatprep.subr.bf16.mxu0 0
    %83 = vmatpush1.bf16.msra.mxu0 0
    %84 = vmatprep.subr.bf16.mxu0 0
    %85 = vmatpush1.bf16.msra.mxu0 0
    %86 = vmatprep.subr.bf16.mxu0 0
    %87 = vmatpush1.bf16.msra.mxu0 0
    %88 = vmatprep.subr.bf16.mxu0 0
    %89 = vmatpush1.bf16.msra.mxu0 0
    %90 = vmatprep.subr.bf16.mxu0 0
    %91 = vmatpush1.bf16.msra.mxu0 0
    %92 = vmatprep.subr.bf16.mxu0 0
    %93 = vmatpush1.bf16.msra.mxu0 0
    %94 = vmatprep.subr.bf16.mxu0 0
    %95 = vmatpush1.bf16.msra.mxu0 0
    %96 = vmatprep.subr.bf16.mxu0 0
    %97 = vmatpush1.bf16.msra.mxu0 0
    %98 = vmatprep.subr.bf16.mxu0 0
    %99 = vmatpush1.bf16.msra.mxu0 0
    %100 = vmatprep.mubr.bf16.mxu0 0
    %101 = vmatmul.mubr.bf16.gmra.mrb[0].mxu0 %v66
    %v102 = vpop.f32.mrb[0].mxu0
    %v103 = vadd.f32 0.0, %v102
    %v104 = vpop.f32.mrb[0].mxu0
    %v105 = vpop.f32.mrb[0].mxu0
    %v106 = vadd.f32 0.0, %v105
    %v107 = vpop.f32.mrb[0].mxu0
    %108 = vdwg.mxu0
    %v109 = vpack.c.bf16 %v106, %v103
    %v111 = vunpack.c.l.b16 %v109
    %v112 = vunpack.c.h.b16 %v109
    %v113 = vpack.c.b16 %v111, %v111
    %v114 = vpack.c.b16 %v112, %v112
    %vm117 = vcmask 781312
    %118 = vst.msk [vmem:[#allocation7] sm:$0xf] %vm117, %v113
    %119 = vst.msk [vmem:[#allocation7 + $0x4] sm:$0xf] %vm117, %v114
    // Predicated region
    $region18: #{tpu_custom_call.1} parent=1 // pred_check
      _
    $region19: #{tpu_custom_call.1} parent=1 // pred_check_branch
      %121 = sbr.rel (0) target = $region21
    $region20: #{tpu_custom_call.1} parent=1 // pred_region
      %s123 = ssub.s32 128, 128
      %124 = vsyncadd [#allocation4], %s123
      %s125 = sshll.u32 [#allocation7], 4
      %s126 = int_to_ptr.vmem [resolvable:$true] %s125
      %131 = dma.vmem_to_hbm [thread:$0]  %s126, 128, %s2, [#allocation4], 64, 64, 4
    $region21: #{tpu_custom_call.1} parent=1 // pred_fallthru
      _
    // Predicated region
    $region22: #{tpu_custom_call.1} parent=1 // pred_check
      _
    $region23: #{tpu_custom_call.1} parent=1 // pred_check_branch
      %133 = sbr.rel (0) target = $region25
    $region24: #{tpu_custom_call.1} parent=1 // pred_region
      %134 = dma.done [#allocation4], 128
    $region25: #{tpu_custom_call.1} parent=1 // pred_fallthru
      _
    %135 = vsyncpa [#allocation3], 1
    %136 = vsyncpa [#allocation6], 1
    %137 = vsyncpa [#allocation4], 1

</llo_original>
